<compile_context>
chip_gen: v7x
topology: tpu7x:2x2x1
jax: 0.10.0
libtpu: 0.0.40
codegen_flags: <defaults>
</compile_context>

<pallas_src>
from dataclasses import dataclass

import jax
import jax.numpy as jnp
from jax.experimental import pallas as pl
from jax.experimental.pallas import tpu as pltpu  # noqa: F401  (TPU backend)

_LANES = 128
_SUBLANES = 8
_TILE = _LANES * _SUBLANES  # pad flattened tensors to a (8,128)-aligned slab


@dataclass
class GraphConfig:
    """Minimal synthetic stand-in for the (unspecified) GraphConfig."""
    n_vertices: int = 16
    feature_dim: int = 32
    batch: int = 2


# --------------------------------------------------------------------------
# Fused lane-dense pass-through kernel (the only defined data path).
# --------------------------------------------------------------------------
def _fused_copy_kernel(*refs):
    # refs = (in_0, ..., in_{n-1}, out_0, ..., out_{n-1}); each is a full
    # (rows, 128) lane-dense VMEM slab -> unmasked full-width stores.
    n = len(refs) // 2
    for x_ref, o_ref in zip(refs[:n], refs[n:]):
        o_ref[...] = x_ref[...]


def _to_lane_dense(x: jax.Array):
    """Flatten to a (rows, 128) slab, padding to an (8,128)-aligned size."""
    flat = x.reshape(-1)
    n = flat.shape[0]
    pad = (-n) % _TILE
    if pad:
        flat = jnp.pad(flat, (0, pad))
    return flat.reshape(-1, _LANES), n


def fused_passthrough(tensors: dict) -> dict:
    """Identity copy of every tensor in `tensors` through a single pallas_call.

    Each tensor is presented to the kernel as a lane-dense (rows, 128) slab;
    the whole slab is one block (grid=(1,)), so the copy is a single DMA
    in / single DMA out per tensor with no per-step pipeline overhead.
    """
    keys = list(tensors.keys())
    slabs, meta = [], []
    for k in keys:
        slab, n_elem = _to_lane_dense(tensors[k])
        slabs.append(slab)
        meta.append((tensors[k].shape, n_elem))

    def full_spec(shape):
        nd = len(shape)
        return pl.BlockSpec(shape, lambda i, _nd=nd: (0,) * _nd)

    outs = pl.pallas_call(
        _fused_copy_kernel,
        out_shape=tuple(
            jax.ShapeDtypeStruct(s.shape, s.dtype) for s in slabs
        ),
        grid=(1,),
        in_specs=[full_spec(s.shape) for s in slabs],
        out_specs=tuple(full_spec(s.shape) for s in slabs),
    )(*slabs)

    result = {}
    for k, slab_out, (shape, n_elem) in zip(keys, outs, meta):
        result[k] = slab_out.reshape(-1)[:n_elem].reshape(shape)
    return result


# --------------------------------------------------------------------------
# Module port
# --------------------------------------------------------------------------
class Graph_Theory_Network:
    """
    JAX/Pallas port of the PyTorch Graph_Theory_Network.

    The reference module declares no layers/parameters and encode(), decode()
    and forward() are all `pass`, so there is no computation to reproduce.
    """

    def __init__(self, config: GraphConfig):
        self.config = config
        # TODO(synk): reference __init__ declares no layers/parameters
        # (GraphConfig-driven architecture is unspecified), so none are built.

    def encode(self, x):
        # TODO(synk): reference encode() body is `pass` (no defined semantics).
        pass

    def decode(self, x):
        # TODO(synk): reference decode() body is `pass` (no defined semantics).
        pass

    def forward(self, x: dict):
        """
        Full pass through encoder and decoder as used in training.

        Reference forward() body is `pass` -> returns None.  No Pallas work is
        launched here: the reference discards everything, so any kernel call
        would be dead work that XLA cannot DCE (custom call).
        """
        # TODO(synk): reference forward() body is `pass`; returning None.
        return None

    __call__ = forward


if __name__ == "__main__":
    cfg = GraphConfig(n_vertices=16, feature_dim=32, batch=2)
    key = jax.random.PRNGKey(0)
    k_adj, k_feat = jax.random.split(key)

    # Synthetic graph-theory inputs: batched adjacency (kept narrow as int8 —
    # no float32 materialization) and per-vertex float32 features.
    adjacency = (
        jax.random.uniform(k_adj, (cfg.batch, cfg.n_vertices, cfg.n_vertices))
        > 0.5
    ).astype(jnp.int8)
    features = jax.random.normal(
        k_feat, (cfg.batch, cfg.n_vertices, cfg.feature_dim), dtype=jnp.float32
    )
    x = {"adjacency": adjacency, "features": features}

    net = Graph_Theory_Network(cfg)

    # Module forward: faithfully returns None (reference body is `pass`).
    out = net(x)
    assert out is None

    # Exercise and verify the Pallas kernel path (single fused launch).
    copied = fused_passthrough(x)
    jax.block_until_ready(copied)
    assert copied["adjacency"].dtype == adjacency.dtype
    assert copied["features"].dtype == features.dtype
    assert jnp.array_equal(copied["adjacency"], adjacency)
    assert jnp.array_equal(copied["features"], features)

    print("KERNEL_OK")
</pallas_src>

<mosaic_0001>
module attributes {stable_mosaic.version = 11 : i64} {
  func.func @_fused_copy_kernel(%arg0: i32, %arg1: memref<8x128xi8, #tpu.memory_space<vmem>>, %arg2: memref<8x128xf32, #tpu.memory_space<vmem>>, %arg3: memref<8x128xi8, #tpu.memory_space<vmem>>, %arg4: memref<8x128xf32, #tpu.memory_space<vmem>>) attributes {dimension_semantics = [#tpu.dimension_semantics<arbitrary>], iteration_bounds = array<i64: 1>, scalar_prefetch = 0 : i64, scratch_operands = 0 : i64, tpu.core_type = #tpu.core_type<tc>, window_params = [{pipeline_mode = #tpu.pipeline_mode<synchronous>, transform_indices = @transform_0, window_bounds = array<i64: 8, 128>}, {pipeline_mode = #tpu.pipeline_mode<synchronous>, transform_indices = @transform_1, window_bounds = array<i64: 8, 128>}, {pipeline_mode = #tpu.pipeline_mode<synchronous>, transform_indices = @transform_2, window_bounds = array<i64: 8, 128>}, {pipeline_mode = #tpu.pipeline_mode<synchronous>, transform_indices = @transform_3, window_bounds = array<i64: 8, 128>}]} {
    %c0 = arith.constant 0 : index
    %c0_0 = arith.constant 0 : index
    %0 = vector.load %arg1[%c0, %c0_0] : memref<8x128xi8, #tpu.memory_space<vmem>>, vector<8x128xi8>
    %c0_1 = arith.constant 0 : index
    %c0_2 = arith.constant 0 : index
    %1 = vector.load %arg3[%c0_1, %c0_2] : memref<8x128xi8, #tpu.memory_space<vmem>>, vector<8x128xi8>
    tpu.vector_store %arg3[%c0_1, %c0_2], %0 {strides = array<i32>} : memref<8x128xi8, #tpu.memory_space<vmem>>, vector<8x128xi8>,
    %c0_3 = arith.constant 0 : index
    %c0_4 = arith.constant 0 : index
    %2 = vector.load %arg2[%c0_3, %c0_4] : memref<8x128xf32, #tpu.memory_space<vmem>>, vector<8x128xf32>
    %c0_5 = arith.constant 0 : index
    %c0_6 = arith.constant 0 : index
    %3 = vector.load %arg4[%c0_5, %c0_6] : memref<8x128xf32, #tpu.memory_space<vmem>>, vector<8x128xf32>
    tpu.vector_store %arg4[%c0_5, %c0_6], %2 {strides = array<i32>} : memref<8x128xf32, #tpu.memory_space<vmem>>, vector<8x128xf32>,
    return
  }
  func.func @transform_0(%arg0: i32) -> (i32, i32) {
    %c0_i32 = arith.constant 0 : i32
    %c0_i32_0 = arith.constant 0 : i32
    %c0_i32_1 = arith.constant 0 : i32
    return %c0_i32, %c0_i32_0 : i32, i32
  }
  func.func @transform_1(%arg0: i32) -> (i32, i32) {
    %c0_i32 = arith.constant 0 : i32
    %c0_i32_0 = arith.constant 0 : i32
    %c0_i32_1 = arith.constant 0 : i32
    return %c0_i32, %c0_i32_0 : i32, i32
  }
  func.func @transform_2(%arg0: i32) -> (i32, i32) {
    %c0_i32 = arith.constant 0 : i32
    %c0_i32_0 = arith.constant 0 : i32
    %c0_i32_1 = arith.constant 0 : i32
    return %c0_i32, %c0_i32_0 : i32, i32
  }
  func.func @transform_3(%arg0: i32) -> (i32, i32) {
    %c0_i32 = arith.constant 0 : i32
    %c0_i32_0 = arith.constant 0 : i32
    %c0_i32_1 = arith.constant 0 : i32
    return %c0_i32, %c0_i32_0 : i32, i32
  }
}

</mosaic_0001>

<llo_original>
// kernel: tpu_custom_call.1
$region0: #{tpu_custom_call.1}
  #allocation0 [shape = 'u32[]', space=smem, size = 0x4, offset = 0x4, fixed_abs, tag = 'smem constant byte address 0x4 - core index']
  #allocation1 [shape = 'u32[144,128]{1,0:T(1,128)}', space=vmem, size = 0x12000, scoped, tag = 'internal scratch']
  %s0 = inlined_call_operand.hbm [shape: s8[8,128], index: 0, kind: input, shape index: {}]
  %s1 = inlined_call_operand.hbm [shape: f32[8,128], index: 1, kind: input, shape index: {}]
  %s2 = inlined_call_operand.hbm [shape: s8[8,128], index: 2, kind: output, shape index: {0}]
  %s3 = inlined_call_operand.hbm [shape: f32[8,128], index: 3, kind: output, shape index: {1}]
  %4 = xla_tuple %s2, %s3
  %s5 = sld [smem:[#allocation0]]
  $region34: #{tpu_custom_call.1} parent=0
    _
  %s7 = ssub.s32 1, %s5
  %s8 = scalar_select 0, %s7, %s5
  $region1: #{tpu_custom_call.1} parent=0
    #allocation2 [shape = 'u8[1024]{0}', space=vmem, size = 0x400, scoped, tag = 'input window, operand 0, single buffered']
    #allocation3 [shape = 's32[1]{0}', space=sflag, size = 0x4, scoped, tag = 'scoped memory for tpu_custom_call.1']
    #allocation4 [shape = 's32[1]{0}', space=sflag, size = 0x4, scoped, tag = 'scoped memory for tpu_custom_call.1']
    #allocation5 [shape = 'u8[4096]{0}', space=vmem, size = 0x1000, scoped, tag = 'input window, operand 1, single buffered']
    #allocation6 [shape = 's32[1]{0}', space=sflag, size = 0x4, scoped, tag = 'scoped memory for tpu_custom_call.1']
    #allocation7 [shape = 'u8[1024]{0}', space=vmem, size = 0x400, scoped, tag = 'output window, operand 0, single buffered']
    #allocation8 [shape = 'u8[4096]{0}', space=vmem, size = 0x1000, scoped, tag = 'output window, operand 1, single buffered']
    #allocation9 [shape = 's32[1]{0}', space=sflag, size = 0x4, scoped, tag = 'scoped memory for tpu_custom_call.1']
    %9 = vsyncpa [#allocation3], 0
    %10 = vsyncpa [#allocation6], 0
    %11 = vsyncpa [#allocation4], 0
    %12 = vsyncpa [#allocation9], 0
    // Predicated region
    $region2: #{tpu_custom_call.1} parent=1 // pred_check
      _
    $region3: #{tpu_custom_call.1} parent=1 // pred_check_branch
      %14 = sbr.rel (0) target = $region5
    $region4: #{tpu_custom_call.1} parent=1 // pred_region
      %s16 = ssub.s32 32, 32
      %17 = vsyncadd [#allocation3], %s16
      %s19 = sshll.u32 [#allocation2], 4
      %s20 = int_to_ptr.vmem [resolvable:$true] %s19
      %22 = dma.hbm_to_vmem [thread:$0]  %s0, 32, %s20, [#allocation3]
    $region5: #{tpu_custom_call.1} parent=1 // pred_fallthru
      _
    // Predicated region
    $region6: #{tpu_custom_call.1} parent=1 // pred_check
      _
    $region7: #{tpu_custom_call.1} parent=1 // pred_check_branch
      %24 = sbr.rel (0) target = $region9
    $region8: #{tpu_custom_call.1} parent=1 // pred_region
      %s26 = ssub.s32 128, 128
      %27 = vsyncadd [#allocation6], %s26
      %s29 = sshll.u32 [#allocation5], 4
      %s30 = int_to_ptr.vmem [resolvable:$true] %s29
      %32 = dma.hbm_to_vmem [thread:$0]  %s1, 128, %s30, [#allocation6]
    $region9: #{tpu_custom_call.1} parent=1 // pred_fallthru
      _
    // Predicated region
    $region10: #{tpu_custom_call.1} parent=1 // pred_check
      _
    $region11: #{tpu_custom_call.1} parent=1 // pred_check_branch
      %34 = sbr.rel (0) target = $region13
    $region12: #{tpu_custom_call.1} parent=1 // pred_region
      %35 = dma.done [#allocation3], 32
    $region13: #{tpu_custom_call.1} parent=1 // pred_fallthru
      _
    // Predicated region
    $region14: #{tpu_custom_call.1} parent=1 // pred_check
      _
    $region15: #{tpu_custom_call.1} parent=1 // pred_check_branch
      %37 = sbr.rel (0) target = $region17
    $region16: #{tpu_custom_call.1} parent=1 // pred_region
      %38 = dma.done [#allocation6], 128
    $region17: #{tpu_custom_call.1} parent=1 // pred_fallthru
      _
    %v39 = vld [vmem:[#allocation2] sm:$0x3]
    %40 = vst [vmem:[#allocation7] sm:$0x3] %v39
    %v41 = vld [vmem:[#allocation5] sm:$0xff]
    %42 = vst [vmem:[#allocation8] sm:$0xff] %v41
    // Predicated region
    $region18: #{tpu_custom_call.1} parent=1 // pred_check
      _
    $region19: #{tpu_custom_call.1} parent=1 // pred_check_branch
      %44 = sbr.rel (0) target = $region21
    $region20: #{tpu_custom_call.1} parent=1 // pred_region
      %s46 = ssub.s32 32, 32
      %47 = vsyncadd [#allocation4], %s46
      %s49 = sshll.u32 [#allocation7], 4
      %s50 = int_to_ptr.vmem [resolvable:$true] %s49
      %52 = dma.vmem_to_hbm [thread:$0]  %s50, 32, %s2, [#allocation4]
    $region21: #{tpu_custom_call.1} parent=1 // pred_fallthru
      _
    // Predicated region
    $region22: #{tpu_custom_call.1} parent=1 // pred_check
      _
    $region23: #{tpu_custom_call.1} parent=1 // pred_check_branch
      %54 = sbr.rel (0) target = $region25
    $region24: #{tpu_custom_call.1} parent=1 // pred_region
      %s56 = ssub.s32 128, 128
      %57 = vsyncadd [#allocation9], %s56
      %s59 = sshll.u32 [#allocation8], 4
      %s60 = int_to_ptr.vmem [resolvable:$true] %s59
      %62 = dma.vmem_to_hbm [thread:$0]  %s60, 128, %s3, [#allocation9]
    $region25: #{tpu_custom_call.1} parent=1 // pred_fallthru
      _
    // Predicated region
    $region26: #{tpu_custom_call.1} parent=1 // pred_check
      _
    $region27: #{tpu_custom_call.1} parent=1 // pred_check_branch
      %64 = sbr.rel (0) target = $region29
    $region28: #{tpu_custom_call.1} parent=1 // pred_region
      %65 = dma.done [#allocation4], 32
    $region29: #{tpu_custom_call.1} parent=1 // pred_fallthru
      _
    // Predicated region
    $region30: #{tpu_custom_call.1} parent=1 // pred_check
      _
    $region31: #{tpu_custom_call.1} parent=1 // pred_check_branch
      %67 = sbr.rel (0) target = $region33
    $region32: #{tpu_custom_call.1} parent=1 // pred_region
      %68 = dma.done [#allocation9], 128
    $region33: #{tpu_custom_call.1} parent=1 // pred_fallthru
      _
    %69 = vsyncpa [#allocation3], 1
    %70 = vsyncpa [#allocation6], 1
    %71 = vsyncpa [#allocation4], 1
    %72 = vsyncpa [#allocation9], 1

</llo_original>
